<compile_context>
chip_gen: v6e
topology: v6e:2x2x1
jax: 0.10.0
libtpu: 0.0.40
codegen_flags: <defaults>
</compile_context>

<pallas_src>
import functools

import numpy as np
import jax
import jax.numpy as jnp
from jax import lax
from jax.experimental import pallas as pl
from jax.experimental.pallas import tpu as pltpu

_GRAY_W = (0.299, 0.587, 0.114)


# --------------------------------------------------------------------- hw budget

@functools.lru_cache(maxsize=None)
def _vmem_limit_bytes():
    """Generation-aware scoped-VMEM budget (v5e/v6e: 128 MiB, v7x: only 64 MiB)."""
    cap = None
    try:
        cap = getattr(pltpu.get_tpu_info(), "vmem_capacity_bytes", None)
    except Exception:
        cap = None
    if not isinstance(cap, (int, np.integer)) or cap <= 0:
        cap = 64 * 1024 * 1024            # conservative fallback (v7x-sized)
    # ~70% of physical VMEM, capped well below the v5e/v6e 128 MiB ceiling.
    return int(min(int(cap) * 7 // 10, 96 * 1024 * 1024))


def _pick_row_tile(rows, max_rows):
    """Largest multiple of 8 that divides `rows` and is <= max_rows (else full rows)."""
    if rows % 8 != 0:
        return rows
    # TODO(synk): pad / mask a tail tile instead of degrading to tiny divisors when
    # `rows` has awkward factors (e.g. 8 * prime).
    max_rows = max(8, min(rows, int(max_rows)))
    best, t = 8, 8
    while t <= max_rows:
        if rows % t == 0:
            best = t
        t += 8
    return best


def _auto_row_cap(B, C, lanes, itemsize, vmem_limit):
    """Row cap so one input block is ~1-4 MiB (2 inputs x 2 pipeline buffers fit easily)."""
    target = max(512 * 1024, min(4 * 1024 * 1024, vmem_limit // 8))
    per_row = max(1, B * C * lanes * itemsize)
    return max(8, target // per_row)


def _pick_band_rows(H, bytes_per_row, vmem_limit):
    """Largest row band (divisor of H; multiple of 8 or H itself) fitting the budget."""
    target = max(8 * bytes_per_row, vmem_limit // 16)
    if H % 8 != 0 or H * bytes_per_row <= target:
        # TODO(synk): H not a multiple of 8 and too large for VMEM needs a padded band.
        return H
    best, h = 8, 8
    while h <= H:
        if H % h == 0 and h * bytes_per_row <= target:
            best = h
        h += 8
    return best


# ----------------------------------------------------------------------- helpers

def _luma(x):
    """(B, 3, ...) f32 -> (B, 1, ...) f32 BT.601 luma (channel axis 1 is a leading dim)."""
    return (_GRAY_W[0] * x[:, 0:1] +
            _GRAY_W[1] * x[:, 1:2] +
            _GRAY_W[2] * x[:, 2:3])


def _per_batch_lane_sum(x):
    """(B, C, rt, L) f32 -> (B, L) f32: reduce rows then channels, keep lanes dense."""
    return jnp.sum(jnp.sum(x, axis=2), axis=1)


# ---------------------------------------------------------------- reduction kernels

def _sums_kernel(p_ref, g_ref, pg_ref, gg_ref, pp_ref, *, to_gray):
    """Accumulate per-batch, per-lane Sum(p*g), Sum(g*g), Sum(p*p) across row tiles."""
    @pl.when(pl.program_id(1) == 0)
    def _init():
        pg_ref[...] = jnp.zeros_like(pg_ref)
        gg_ref[...] = jnp.zeros_like(gg_ref)
        pp_ref[...] = jnp.zeros_like(pp_ref)

    p = p_ref[...].astype(jnp.float32)
    g = g_ref[...].astype(jnp.float32)
    if to_gray:
        p = _luma(p)
        g = _luma(g)
    pg_ref[...] += _per_batch_lane_sum(p * g)[None]
    gg_ref[...] += _per_batch_lane_sum(g * g)[None]
    pp_ref[...] += _per_batch_lane_sum(p * p)[None]


def _sse_kernel(p_ref, g_ref, sse_ref, *, to_gray):
    """Accumulate per-batch, per-lane Sum((p - g)^2) across row tiles."""
    @pl.when(pl.program_id(1) == 0)
    def _init():
        sse_ref[...] = jnp.zeros_like(sse_ref)

    p = p_ref[...].astype(jnp.float32)
    g = g_ref[...].astype(jnp.float32)
    if to_gray:
        p = _luma(p)
        g = _luma(g)
    d = p - g
    sse_ref[...] += _per_batch_lane_sum(d * d)[None]


def _reduction_specs(B, C, rows, lanes, row_tile, n_bands):
    tiles_per_band = (rows // row_tile) // n_bands

    def in_map(b, k, tpb=tiles_per_band):
        return (0, 0, b * tpb + k, 0)

    in_spec = pl.BlockSpec((B, C, row_tile, lanes), in_map)
    out_spec = pl.BlockSpec((1, B, lanes), lambda b, k: (b, 0, 0))
    out_shape = jax.ShapeDtypeStruct((n_bands, B, lanes), jnp.float32)
    grid = (n_bands, tiles_per_band)
    return grid, in_spec, out_spec, out_shape


def _sums_partials(p4, g4, *, to_gray, row_tile, n_bands, vmem_limit):
    B, C, rows, lanes = p4.shape
    grid, in_spec, out_spec, out_shape = _reduction_specs(B, C, rows, lanes,
                                                          row_tile, n_bands)
    return pl.pallas_call(
        functools.partial(_sums_kernel, to_gray=to_gray),
        out_shape=(out_shape, out_shape, out_shape),
        grid=grid,
        in_specs=[in_spec, in_spec],
        out_specs=(out_spec, out_spec, out_spec),
        compiler_params=pltpu.CompilerParams(
            dimension_semantics=("parallel", "arbitrary"),
            vmem_limit_bytes=vmem_limit),
    )(p4, g4)


def _sse_partials(p4, g4, *, to_gray, row_tile, n_bands, vmem_limit):
    B, C, rows, lanes = p4.shape
    grid, in_spec, out_spec, out_shape = _reduction_specs(B, C, rows, lanes,
                                                          row_tile, n_bands)
    return pl.pallas_call(
        functools.partial(_sse_kernel, to_gray=to_gray),
        out_shape=out_shape,
        grid=grid,
        in_specs=[in_spec, in_spec],
        out_specs=out_spec,
        compiler_params=pltpu.CompilerParams(
            dimension_semantics=("parallel", "arbitrary"),
            vmem_limit_bytes=vmem_limit),
    )(p4, g4)


# ---------------------------------------------------------------- translation kernel

def _trans_kernel(p_ref, g_ref, o_ref, *, trans_range, H):
    """Per y-shift (grid axis 0), accumulate the x-shift SSE row over row bands (axis 1)."""
    R = trans_range
    S = 2 * R + 1
    B, Cg, hb, W = p_ref.shape

    @pl.when(pl.program_id(1) == 0)
    def _init():
        o_ref[...] = jnp.zeros_like(o_ref)

    y0 = pl.program_id(0) - R
    row0 = pl.program_id(1) * hb                      # global row offset of this band

    sp = p_ref[...].astype(jnp.float32).reshape(B * Cg, hb, W)
    gy = g_ref[...].astype(jnp.float32).reshape(B * Cg, hb, W)   # wrapped rows pre-zeroed

    # Valid-row mask for this y-shift; the matching rows of `gy` were zeroed in the
    # wrapper, so masking `sp` once per step suffices.
    row_id = row0 + lax.broadcasted_iota(jnp.int32, (1, hb, 1), 1)
    ymin = jnp.maximum(0, y0)
    ymax = jnp.minimum(H, H + y0)
    sp_r = sp * ((row_id >= ymin) & (row_id < ymax)).astype(jnp.float32)

    col_id = lax.broadcasted_iota(jnp.int32, (1, 1, W), 2)
    lane_id = lax.broadcasted_iota(jnp.int32, (1, 1, S), 2)
    acc = jnp.zeros((1, 1, S), jnp.float32)
    for xi, x0 in enumerate(range(-R, R + 1)):
        sx = x0 % W
        g_x = pltpu.roll(gy, sx, axis=2) if sx else gy          # static lane roll (XLU)
        cmf = ((col_id >= max(0, x0)) &
               (col_id < min(W, W + x0))).astype(jnp.float32)    # tiny (1,1,W) mask
        d = (sp_r - g_x) * cmf
        acc = acc + jnp.sum(d * d) * (lane_id == xi).astype(jnp.float32)
    o_ref[...] += acc
    # TODO(synk): move the cross term onto the MXU (prefix sums + per-row correlation
    # matmuls) to offload the VPU entirely for large trans_range.


def _trans_path(pred, gt, scale_b, *, to_gray, trans_range, reduction, vmem_limit):
    B, C, H, W = pred.shape
    Cg = 1 if to_gray else C
    R = int(trans_range)
    S = 2 * R + 1

    p_in = _luma(pred.astype(jnp.float32)) if to_gray else pred.astype(jnp.float32)
    g_in = _luma(gt.astype(jnp.float32)) if to_gray else gt.astype(jnp.float32)
    if scale_b is not None:
        p_in = p_in * scale_b.reshape(B, 1, 1, 1).astype(jnp.float32)

    # Pre-roll gt along H for each y-shift and zero the wrapped rows so the kernel
    # only needs static lane rolls and a single row-mask multiply on `p`.
    ar = np.arange(H)
    shifted = []
    for y0 in range(-R, R + 1):
        rmask = ((ar >= max(0, y0)) & (ar < min(H, H + y0))).astype(np.float32)
        shifted.append(jnp.roll(g_in, y0, axis=2) * rmask.reshape(1, 1, H, 1))
    g_stack = jnp.stack(shifted, axis=0)                          # (S, B, Cg, H, W)

    # Row-band the images so VMEM stays bounded for large frames (no halo needed).
    hb = _pick_band_rows(H, B * Cg * W * 4, vmem_limit)
    n_rb = H // hb
    # TODO(synk): pad W to a multiple of 128 lanes for the translation path (sub-vreg
    # lane rolls are correct but slow for arbitrary W).

    sums = pl.pallas_call(
        functools.partial(_trans_kernel, trans_range=R, H=H),
        out_shape=jax.ShapeDtypeStruct((S, 1, S), jnp.float32),
        grid=(S, n_rb),
        in_specs=[pl.BlockSpec((B, Cg, hb, W), lambda yi, rb: (0, 0, rb, 0)),
                  pl.BlockSpec((1, B, Cg, hb, W), lambda yi, rb: (yi, 0, 0, rb, 0))],
        out_specs=pl.BlockSpec((1, 1, S), lambda yi, rb: (yi, 0, 0)),
        compiler_params=pltpu.CompilerParams(
            dimension_semantics=("parallel", "arbitrary"),
            vmem_limit_bytes=vmem_limit),
    )(p_in, g_stack)
    sums = sums.reshape(S, S)

    offs = np.abs(np.arange(-R, R + 1))
    counts = (B * Cg) * np.outer(H - offs, W - offs).astype(np.float32)
    if reduction == 'mean':
        sums = sums / jnp.asarray(counts, jnp.float32)
    return jnp.min(sums).reshape(1)       # PyTorch translation path returns shape (1,)


# --------------------------------------------------------------------- public wrapper

def optimized_mse(prediction, gt, *, grayscale=True, scale_opt=False,
                  trans_opt=False, trans_range=5, reduction='mean',
                  block_rows=None):
    """Forward pass of _OptimizedMSE (scale / translation optimized MSE)."""
    # TODO(synk): reduction='none' (elementwise MSELoss output) not implemented.
    assert reduction in ('mean', 'sum')
    assert prediction.shape == gt.shape and prediction.ndim == 4

    B, C, H, W = prediction.shape
    to_gray = bool(grayscale and C == 3)
    Cg = 1 if to_gray else C
    vmem_limit = _vmem_limit_bytes()

    # Lane-dense view for the streaming reduction kernels: (B, C, H*W/128, 128) when
    # possible (contiguity-preserving reshape), else tile (H, W) directly.
    N = H * W
    if N % 128 == 0:
        rows, lanes = N // 128, 128
    else:
        rows, lanes = H, W
    p4 = prediction.reshape(B, C, rows, lanes)
    g4 = gt.reshape(B, C, rows, lanes)

    itemsize = prediction.dtype.itemsize
    cap = block_rows if block_rows is not None else _auto_row_cap(
        B, C, lanes, itemsize, vmem_limit)
    row_tile = _pick_row_tile(rows, cap)
    tiles = rows // row_tile
    n_bands = 2 if (tiles % 2 == 0 and tiles >= 2) else 1   # v7x: one band per core

    scale_b = spg = sgg = spp = None
    if scale_opt:
        pg, gg, pp = _sums_partials(p4, g4, to_gray=to_gray, row_tile=row_tile,
                                    n_bands=n_bands, vmem_limit=vmem_limit)
        spg = jnp.sum(pg, axis=(0, 2))          # (B,)
        sgg = jnp.sum(gg, axis=(0, 2))
        spp = jnp.sum(pp, axis=(0, 2))
        # No den == 0 guard (all-zero gt -> inf/nan) to match the PyTorch reference.
        scale_b = spg / sgg

    if trans_opt:
        return _trans_path(prediction, gt, scale_b, to_gray=to_gray,
                           trans_range=trans_range, reduction=reduction,
                           vmem_limit=vmem_limit)

    if scale_opt:
        # Single fused pass: SSE_b = s^2*Sum(p^2) - 2*s*Sum(p*g) + Sum(g^2).
        sse_b = scale_b * scale_b * spp - 2.0 * scale_b * spg + sgg
        total = jnp.sum(sse_b)
    else:
        sse = _sse_partials(p4, g4, to_gray=to_gray, row_tile=row_tile,
                            n_bands=n_bands, vmem_limit=vmem_limit)
        total = jnp.sum(sse)
    if reduction == 'mean':
        total = total / jnp.float32(B * Cg * H * W)
    return total.reshape(())


# ------------------------------------------------------------------ pure-JAX reference

def _ref_gray(x):
    w = jnp.asarray(_GRAY_W, dtype=x.dtype).reshape(1, 3, 1, 1)
    return jnp.sum(x * w, axis=1, keepdims=True)


def _ref_forward(pred, gt, grayscale=True, scale_opt=False, trans_opt=False,
                 trans_range=5, reduction='mean'):
    if grayscale and pred.shape[1] == 3:
        pred, gt = _ref_gray(pred), _ref_gray(gt)
    if scale_opt:
        nom = jnp.sum(pred * gt, axis=(1, 2, 3), keepdims=True)
        den = jnp.sum(gt * gt, axis=(1, 2, 3), keepdims=True)
        pred = (nom / den) * pred

    def mse(a, b):
        d = a - b
        return jnp.mean(d * d) if reduction == 'mean' else jnp.sum(d * d)

    if trans_opt:
        h, w = pred.shape[2:4]
        best = jnp.float32(np.finfo(np.float32).max)
        for y0 in range(-trans_range, trans_range + 1):
            pym, pyM, gym, gyM = max(0, y0), min(h, h + y0), max(0, -y0), min(h, h - y0)
            for x0 in range(-trans_range, trans_range + 1):
                pxm, pxM, gxm, gxM = max(0, x0), min(w, w + x0), max(0, -x0), min(w, w - x0)
                best = jnp.minimum(best, mse(pred[:, :, pym:pyM, pxm:pxM],
                                             gt[:, :, gym:gyM, gxm:gxM]))
        return best.reshape(1)
    return mse(pred, gt)


# ----------------------------------------------------------------------------- main

if __name__ == "__main__":
    key = jax.random.PRNGKey(0)

    configs = [
        dict(grayscale=True,  scale_opt=False, trans_opt=False, reduction='mean'),  # default
        dict(grayscale=True,  scale_opt=True,  trans_opt=False, reduction='mean'),
        dict(grayscale=False, scale_opt=True,  trans_opt=False, reduction='sum'),
        dict(grayscale=True,  scale_opt=True,  trans_opt=True, trans_range=2, reduction='mean'),
        dict(grayscale=False, scale_opt=False, trans_opt=True, trans_range=2, reduction='sum'),
    ]

    for (B, C, H, W) in [(2, 3, 16, 16), (2, 3, 64, 64)]:
        kp, kg = jax.random.split(jax.random.fold_in(key, H))
        pred = jax.random.uniform(kp, (B, C, H, W), dtype=jnp.float32)
        gt = jax.random.uniform(kg, (B, C, H, W), dtype=jnp.float32)
        for cfg in configs:
            out = jax.block_until_ready(optimized_mse(pred, gt, **cfg))
            ref = jax.block_until_ready(_ref_forward(pred, gt, **cfg))
            np.testing.assert_allclose(np.asarray(out), np.asarray(ref),
                                       rtol=5e-5, atol=1e-6)

    # Force a multi-step reduction grid (rows = 32 -> four 8-row tiles, two "parallel"
    # bands of two accumulating tiles each) to exercise the pl.when init + resident
    # accumulator + band-partial paths.
    kp, kg = jax.random.split(jax.random.fold_in(key, 1234))
    pred = jax.random.uniform(kp, (2, 3, 64, 64), dtype=jnp.float32)
    gt = jax.random.uniform(kg, (2, 3, 64, 64), dtype=jnp.float32)
    for cfg in configs[:3]:
        out = jax.block_until_ready(optimized_mse(pred, gt, block_rows=8, **cfg))
        ref = jax.block_until_ready(_ref_forward(pred, gt, **cfg))
        np.testing.assert_allclose(np.asarray(out), np.asarray(ref),
                                   rtol=5e-5, atol=1e-6)

    print("KERNEL_OK")
</pallas_src>

<mosaic_0001>
module attributes {stable_mosaic.version = 11 : i64} {
  func.func @_sse_kernel(%arg0: i32, %arg1: i32, %arg2: memref<2x3x2x128xf32, #tpu.memory_space<vmem>>, %arg3: memref<2x3x2x128xf32, #tpu.memory_space<vmem>>, %arg4: memref<1x2x128xf32, #tpu.memory_space<vmem>>) attributes {dimension_semantics = [#tpu.dimension_semantics<parallel>, #tpu.dimension_semantics<arbitrary>], iteration_bounds = array<i64: 1, 1>, scalar_prefetch = 0 : i64, scratch_operands = 0 : i64, tpu.core_type = #tpu.core_type<tc>, window_params = [{transform_indices = @transform_0, window_bounds = array<i64: 2, 3, 2, 128>}, {transform_indices = @transform_1, window_bounds = array<i64: 2, 3, 2, 128>}, {transform_indices = @transform_2, window_bounds = array<i64: 1, 2, 128>}]} {
    %c0_i32 = arith.constant 0 : i32
    %0 = arith.cmpi eq, %arg1, %c0_i32 : i32
    %1 = arith.extui %0 : i1 to i32
    %c0_i32_0 = arith.constant 0 : i32
    %2 = arith.cmpi ne, %1, %c0_i32_0 : i32
    scf.if %2 {
      %cst_21 = arith.constant 0.000000e+00 : f32
      %35 = vector.broadcast %cst_21 : f32 to vector<1x2x128xf32>
      %c0_22 = arith.constant 0 : index
      %c0_23 = arith.constant 0 : index
      %c0_24 = arith.constant 0 : index
      %36 = vector.load %arg4[%c0_22, %c0_23, %c0_24] : memref<1x2x128xf32, #tpu.memory_space<vmem>>, vector<1x2x128xf32>
      tpu.vector_store %arg4[%c0_22, %c0_23, %c0_24], %35 {strides = array<i32>} : memref<1x2x128xf32, #tpu.memory_space<vmem>>, vector<1x2x128xf32>,
    } else {
    }
    %c0 = arith.constant 0 : index
    %c0_1 = arith.constant 0 : index
    %c0_2 = arith.constant 0 : index
    %c0_3 = arith.constant 0 : index
    %3 = vector.load %arg2[%c0, %c0_1, %c0_2, %c0_3] : memref<2x3x2x128xf32, #tpu.memory_space<vmem>>, vector<2x3x2x128xf32>
    %c0_4 = arith.constant 0 : index
    %c0_5 = arith.constant 0 : index
    %c0_6 = arith.constant 0 : index
    %c0_7 = arith.constant 0 : index
    %4 = vector.load %arg3[%c0_4, %c0_5, %c0_6, %c0_7] : memref<2x3x2x128xf32, #tpu.memory_space<vmem>>, vector<2x3x2x128xf32>
    %5 = vector.extract_strided_slice %3 {offsets = [0, 0, 0, 0], sizes = [2, 1, 2, 128], strides = [1, 1, 1, 1]} : vector<2x3x2x128xf32> to vector<2x1x2x128xf32>
    %cst = arith.constant 2.990000e-01 : f32
    %6 = vector.broadcast %cst : f32 to vector<2x1x2x128xf32>
    %7 = arith.mulf %6, %5 : vector<2x1x2x128xf32>
    %8 = vector.extract_strided_slice %3 {offsets = [0, 1, 0, 0], sizes = [2, 1, 2, 128], strides = [1, 1, 1, 1]} : vector<2x3x2x128xf32> to vector<2x1x2x128xf32>
    %cst_8 = arith.constant 5.870000e-01 : f32
    %9 = vector.broadcast %cst_8 : f32 to vector<2x1x2x128xf32>
    %10 = arith.mulf %9, %8 : vector<2x1x2x128xf32>
    %11 = arith.addf %7, %10 : vector<2x1x2x128xf32>
    %12 = vector.extract_strided_slice %3 {offsets = [0, 2, 0, 0], sizes = [2, 1, 2, 128], strides = [1, 1, 1, 1]} : vector<2x3x2x128xf32> to vector<2x1x2x128xf32>
    %cst_9 = arith.constant 1.140000e-01 : f32
    %13 = vector.broadcast %cst_9 : f32 to vector<2x1x2x128xf32>
    %14 = arith.mulf %13, %12 : vector<2x1x2x128xf32>
    %15 = arith.addf %11, %14 : vector<2x1x2x128xf32>
    %16 = vector.extract_strided_slice %4 {offsets = [0, 0, 0, 0], sizes = [2, 1, 2, 128], strides = [1, 1, 1, 1]} : vector<2x3x2x128xf32> to vector<2x1x2x128xf32>
    %cst_10 = arith.constant 2.990000e-01 : f32
    %17 = vector.broadcast %cst_10 : f32 to vector<2x1x2x128xf32>
    %18 = arith.mulf %17, %16 : vector<2x1x2x128xf32>
    %19 = vector.extract_strided_slice %4 {offsets = [0, 1, 0, 0], sizes = [2, 1, 2, 128], strides = [1, 1, 1, 1]} : vector<2x3x2x128xf32> to vector<2x1x2x128xf32>
    %cst_11 = arith.constant 5.870000e-01 : f32
    %20 = vector.broadcast %cst_11 : f32 to vector<2x1x2x128xf32>
    %21 = arith.mulf %20, %19 : vector<2x1x2x128xf32>
    %22 = arith.addf %18, %21 : vector<2x1x2x128xf32>
    %23 = vector.extract_strided_slice %4 {offsets = [0, 2, 0, 0], sizes = [2, 1, 2, 128], strides = [1, 1, 1, 1]} : vector<2x3x2x128xf32> to vector<2x1x2x128xf32>
    %cst_12 = arith.constant 1.140000e-01 : f32
    %24 = vector.broadcast %cst_12 : f32 to vector<2x1x2x128xf32>
    %25 = arith.mulf %24, %23 : vector<2x1x2x128xf32>
    %26 = arith.addf %22, %25 : vector<2x1x2x128xf32>
    %27 = arith.subf %15, %26 : vector<2x1x2x128xf32>
    %c0_13 = arith.constant 0 : index
    %c0_14 = arith.constant 0 : index
    %c0_15 = arith.constant 0 : index
    %28 = vector.load %arg4[%c0_13, %c0_14, %c0_15] : memref<1x2x128xf32, #tpu.memory_space<vmem>>, vector<1x2x128xf32>
    %29 = arith.mulf %27, %27 : vector<2x1x2x128xf32>
    %cst_16 = arith.constant dense<0.000000e+00> : vector<2x1x128xf32>
    %30 = vector.multi_reduction <add>, %29, %cst_16 [2] : vector<2x1x2x128xf32> to vector<2x1x128xf32>
    %cst_17 = arith.constant dense<0.000000e+00> : vector<2x128xf32>
    %31 = vector.multi_reduction <add>, %30, %cst_17 [1] : vector<2x1x128xf32> to vector<2x128xf32>
    %32 = vector.shape_cast %31 : vector<2x128xf32> to vector<1x2x128xf32>
    %33 = arith.addf %28, %32 : vector<1x2x128xf32>
    %c0_18 = arith.constant 0 : index
    %c0_19 = arith.constant 0 : index
    %c0_20 = arith.constant 0 : index
    %34 = vector.load %arg4[%c0_18, %c0_19, %c0_20] : memref<1x2x128xf32, #tpu.memory_space<vmem>>, vector<1x2x128xf32>
    tpu.vector_store %arg4[%c0_18, %c0_19, %c0_20], %33 {strides = array<i32>} : memref<1x2x128xf32, #tpu.memory_space<vmem>>, vector<1x2x128xf32>,
    return
  }
  func.func @transform_0(%arg0: i32, %arg1: i32) -> (i32, i32, i32, i32) {
    %c1_i32 = arith.constant 1 : i32
    %0 = arith.muli %arg0, %c1_i32 : i32
    %1 = arith.addi %0, %arg1 : i32
    %c0_i32 = arith.constant 0 : i32
    %c0_i32_0 = arith.constant 0 : i32
    %c0_i32_1 = arith.constant 0 : i32
    %c0_i32_2 = arith.constant 0 : i32
    return %c0_i32, %c0_i32_0, %1, %c0_i32_1 : i32, i32, i32, i32
  }
  func.func @transform_1(%arg0: i32, %arg1: i32) -> (i32, i32, i32, i32) {
    %c1_i32 = arith.constant 1 : i32
    %0 = arith.muli %arg0, %c1_i32 : i32
    %1 = arith.addi %0, %arg1 : i32
    %c0_i32 = arith.constant 0 : i32
    %c0_i32_0 = arith.constant 0 : i32
    %c0_i32_1 = arith.constant 0 : i32
    %c0_i32_2 = arith.constant 0 : i32
    return %c0_i32, %c0_i32_0, %1, %c0_i32_1 : i32, i32, i32, i32
  }
  func.func @transform_2(%arg0: i32, %arg1: i32) -> (i32, i32, i32) {
    %c0_i32 = arith.constant 0 : i32
    %c0_i32_0 = arith.constant 0 : i32
    %c0_i32_1 = arith.constant 0 : i32
    return %arg0, %c0_i32, %c0_i32_0 : i32, i32, i32
  }
}

</mosaic_0001>

<llo_original>
// kernel: tpu_custom_call.1
$region0: #{tpu_custom_call.1}
  #allocation0 [shape = 'u32[]', space=smem, size = 0x4, offset = 0x4, fixed_abs, tag = 'smem constant byte address 0x4 - core index']
  #allocation1 [shape = 'u32[144,128]{1,0:T(1,128)}', space=vmem, size = 0x12000, scoped, tag = 'internal scratch']
  %s0 = inlined_call_operand.hbm [shape: f32[2,3,2,128], index: 0, kind: input, shape index: {}]
  %s1 = inlined_call_operand.hbm [shape: f32[2,3,2,128], index: 1, kind: input, shape index: {}]
  %s2 = inlined_call_operand.hbm [shape: f32[1,2,128], index: 2, kind: output, shape index: {}]
  %s3 = sld [smem:[#allocation0]]
  $region30: #{tpu_custom_call.1} parent=0
    _
  %s5 = ssub.s32 1, %s3
  %s6 = scalar_select 0, %s5, %s3
  $region1: #{tpu_custom_call.1} parent=0
    #allocation2 [shape = 'u8[6144]{0}', space=vmem, size = 0x1800, scoped, tag = 'input window, operand 0, single buffered']
    #allocation3 [shape = 's32[1]{0}', space=sflag, size = 0x4, scoped, tag = 'scoped memory for tpu_custom_call.1']
    #allocation4 [shape = 's32[1]{0}', space=sflag, size = 0x4, scoped, tag = 'scoped memory for tpu_custom_call.1']
    #allocation5 [shape = 'u8[6144]{0}', space=vmem, size = 0x1800, scoped, tag = 'input window, operand 1, single buffered']
    #allocation6 [shape = 's32[1]{0}', space=sflag, size = 0x4, scoped, tag = 'scoped memory for tpu_custom_call.1']
    #allocation7 [shape = 'u8[1024]{0}', space=vmem, size = 0x400, scoped, tag = 'output window, operand 0, single buffered']
    %7 = vsyncpa [#allocation3], 0
    %8 = vsyncpa [#allocation6], 0
    %9 = vsyncpa [#allocation4], 0
    // Predicated region
    $region2: #{tpu_custom_call.1} parent=1 // pred_check
      _
    $region3: #{tpu_custom_call.1} parent=1 // pred_check_branch
      %11 = sbr.rel (0) target = $region5
    $region4: #{tpu_custom_call.1} parent=1 // pred_region
      %s12 = sadd.s32 0, 0
      %s14 = ssub.s32 192, 192
      %15 = vsyncadd [#allocation3], %s14
      %s16 = smul.addr %s12, 32
      %s17 = scalar_lea.hbm %s0, %s16
      %s18 = sshll.u32 [#allocation2], 4
      %s19 = int_to_ptr.vmem [resolvable:$true] %s18
      %24 = dma.hbm_to_vmem [thread:$0]  %s17, 192, %s19, [#allocation3], 32, 32, 2
    $region5: #{tpu_custom_call.1} parent=1 // pred_fallthru
      _
    // Predicated region
    $region6: #{tpu_custom_call.1} parent=1 // pred_check
      _
    $region7: #{tpu_custom_call.1} parent=1 // pred_check_branch
      %26 = sbr.rel (0) target = $region9
    $region8: #{tpu_custom_call.1} parent=1 // pred_region
      %s27 = sadd.s32 0, 0
      %s29 = ssub.s32 192, 192
      %30 = vsyncadd [#allocation6], %s29
      %s31 = smul.addr %s27, 32
      %s32 = scalar_lea.hbm %s1, %s31
      %s33 = sshll.u32 [#allocation5], 4
      %s34 = int_to_ptr.vmem [resolvable:$true] %s33
      %39 = dma.hbm_to_vmem [thread:$0]  %s32, 192, %s34, [#allocation6], 32, 32, 2
    $region9: #{tpu_custom_call.1} parent=1 // pred_fallthru
      _
    // Predicated region
    $region10: #{tpu_custom_call.1} parent=1 // pred_check
      _
    $region11: #{tpu_custom_call.1} parent=1 // pred_check_branch
      %41 = sbr.rel (0) target = $region13
    $region12: #{tpu_custom_call.1} parent=1 // pred_region
      %42 = dma.done [#allocation3], 192
    $region13: #{tpu_custom_call.1} parent=1 // pred_fallthru
      _
    // Predicated region
    $region14: #{tpu_custom_call.1} parent=1 // pred_check
      _
    $region15: #{tpu_custom_call.1} parent=1 // pred_check_branch
      %44 = sbr.rel (0) target = $region17
    $region16: #{tpu_custom_call.1} parent=1 // pred_region
      %45 = dma.done [#allocation6], 192
    $region17: #{tpu_custom_call.1} parent=1 // pred_fallthru
      _
    %s46 = sadd.s32 0, 0
    %s47 = sadd.s32 0, 0
    %p48 = scmp.eq.s32.totalorder 0, 0
    // Predicated region
    $region18: #{tpu_custom_call.1} parent=1 // pred_check
      %p49 = pneg %p48
    $region19: #{tpu_custom_call.1} parent=1 // pred_check_branch
      %51 = sbr.rel (%p49) target = $region21
    $region20: #{tpu_custom_call.1} parent=1 // pred_region
      %52 = vst [vmem:[#allocation7] sm:$0x3] 0.0
    $region21: #{tpu_custom_call.1} parent=1 // pred_fallthru
      _
    %v53 = vld [vmem:[#allocation2] sm:$0x3]
    %v54 = vld [vmem:[#allocation2 + $0x2] sm:$0x3]
    %v55 = vld [vmem:[#allocation2 + $0x4] sm:$0x3]
    %v56 = vld [vmem:[#allocation2 + $0x6] sm:$0x3]
    %v57 = vld [vmem:[#allocation2 + $0x8] sm:$0x3]
    %v58 = vld [vmem:[#allocation2 + $0xa] sm:$0x3]
    %v59 = vld [vmem:[#allocation5] sm:$0x3]
    %v60 = vld [vmem:[#allocation5 + $0x2] sm:$0x3]
    %v61 = vld [vmem:[#allocation5 + $0x4] sm:$0x3]
    %v62 = vld [vmem:[#allocation5 + $0x6] sm:$0x3]
    %v63 = vld [vmem:[#allocation5 + $0x8] sm:$0x3]
    %v64 = vld [vmem:[#allocation5 + $0xa] sm:$0x3]
    %v65 = vmul.f32 %v53, 0.299
    %v66 = vmul.f32 %v56, 0.299
    %v67 = vmul.f32 %v54, 0.587
    %v68 = vmul.f32 %v57, 0.587
    %v69 = vadd.f32 %v65, %v67
    %v70 = vadd.f32 %v66, %v68
    %v71 = vmul.f32 %v55, 0.114
    %v72 = vmul.f32 %v58, 0.114
    %v73 = vadd.f32 %v69, %v71
    %v74 = vadd.f32 %v70, %v72
    %v75 = vmul.f32 %v59, 0.299
    %v76 = vmul.f32 %v62, 0.299
    %v77 = vmul.f32 %v60, 0.587
    %v78 = vmul.f32 %v63, 0.587
    %v79 = vadd.f32 %v75, %v77
    %v80 = vadd.f32 %v76, %v78
    %v81 = vmul.f32 %v61, 0.114
    %v82 = vmul.f32 %v64, 0.114
    %v83 = vadd.f32 %v79, %v81
    %v84 = vadd.f32 %v80, %v82
    %v85 = vsub.f32 %v73, %v83
    %v86 = vsub.f32 %v74, %v84
    %v87 = vld [vmem:[#allocation7] sm:$0x3]
    %v88 = vmul.f32 %v85, %v85
    %v89 = vmul.f32 %v86, %v86
    %vm90 = vcmask 1041408
    %v91 = vsel %vm90, %v88, 0.0
    %v92 = vrot.slane %v91, 4
    %v93 = vadd.f32 %v91, %v92
    %v94 = vrot.slane %v93, 2
    %v95 = vadd.f32 %v93, %v94
    %v96 = vrot.slane %v95, 1
    %v97 = vadd.f32 %v95, %v96
    %v98 = vsel %vm90, %v89, 0.0
    %v99 = vrot.slane %v98, 4
    %v100 = vadd.f32 %v98, %v99
    %v101 = vrot.slane %v100, 2
    %v102 = vadd.f32 %v100, %v101
    %v103 = vrot.slane %v102, 1
    %v104 = vadd.f32 %v102, %v103
    %v105 = vadd.f32 %v97, 0.0
    %v106 = vadd.f32 %v104, 0.0
    %vm109 = vcmask 1041409
    %v110 = vsel %vm109, %v106, %v105
    %v112 = vadd.f32 %v87, %v110
    %113 = vst [vmem:[#allocation7] sm:$0x3] %v112
    // Predicated region
    $region22: #{tpu_custom_call.1} parent=1 // pred_check
      _
    $region23: #{tpu_custom_call.1} parent=1 // pred_check_branch
      %115 = sbr.rel (0) target = $region25
    $region24: #{tpu_custom_call.1} parent=1 // pred_region
      %s117 = ssub.s32 32, 32
      %118 = vsyncadd [#allocation4], %s117
      %s120 = sshll.u32 [#allocation7], 4
      %s121 = int_to_ptr.vmem [resolvable:$true] %s120
      %123 = dma.vmem_to_hbm [thread:$0]  %s121, 32, %s2, [#allocation4]
    $region25: #{tpu_custom_call.1} parent=1 // pred_fallthru
      _
    // Predicated region
    $region26: #{tpu_custom_call.1} parent=1 // pred_check
      _
    $region27: #{tpu_custom_call.1} parent=1 // pred_check_branch
      %125 = sbr.rel (0) target = $region29
    $region28: #{tpu_custom_call.1} parent=1 // pred_region
      %126 = dma.done [#allocation4], 32
    $region29: #{tpu_custom_call.1} parent=1 // pred_fallthru
      _
    %127 = vsyncpa [#allocation3], 1
    %128 = vsyncpa [#allocation6], 1
    %129 = vsyncpa [#allocation4], 1

</llo_original>
